<compile_context>
chip_gen: v7x
topology: tpu7x:2x2x1
jax: 0.10.0
libtpu: 0.0.40
codegen_flags: <defaults>
</compile_context>

<pallas_src>
import functools

import jax
import jax.numpy as jnp
from jax.experimental import pallas as pl
from jax.experimental.pallas import tpu as pltpu

LANES = 128  # lane-dense MXU operand width


def _net_kernel(x_ref, y_ref, wt_ref, o_ref, *, out_features):
    # Elementwise hot path on the VPU/EUP: sin(x) + cos(y).
    act = jnp.sin(x_ref[...]) + jnp.cos(y_ref[...])
    # Single MXU matmul against the lane-dense padded weight, then store only
    # the real output columns (masked 10-lane vst; no wrapper-side slice).
    res = jnp.dot(act, wt_ref[...], preferred_element_type=jnp.float32)
    o_ref[...] = res[:, :out_features]


def prepare_params(weight):
    """One-time parameter prep (NOT on the per-call path).

    weight: (O, D) -> transposed + zero-padded to (D, Opad), Opad multiple
    of 128, so the MXU sees a canonical lane-dense RHS.
    Bias is identically zero for this Net; a nonzero bias would simply be
    added post-matmul in the kernel.
    """
    O, D = weight.shape
    o_pad = max(LANES, ((O + LANES - 1) // LANES) * LANES)
    wt = jnp.zeros((D, o_pad), jnp.float32).at[:, :O].set(weight.T.astype(jnp.float32))
    return wt


def _choose_batch_tile(B):
    # Aim for >= ~8 grid steps (v7x: 2 TCs x >= 4 steps each) while keeping
    # each step's DMA well above the ~0.35 us per-step pipeline overhead.
    # tb <= 4096 keeps double-buffered VMEM (~2 x 1 MiB per input) tiny on
    # every generation (incl. v7x's 64 MiB physical / 32 MiB scoped VMEM).
    tb = max(512, min(4096, B // 8))
    return ((tb + 7) // 8) * 8  # sublane multiple


def net_forward(x, y, wt_pad, out_features, *, small_path_rows=1024):
    """x, y: (B, D) float32; wt_pad: (D, Opad). Returns (B, out_features)."""
    B, D = x.shape
    o_pad = wt_pad.shape[1]
    kernel = functools.partial(_net_kernel, out_features=out_features)

    if B <= small_path_rows:
        # Tiny problem: grid-less call, everything resident in VMEM, zero
        # per-step pipeline overhead.  Explicit VMEM specs (no ANY fallback).
        return pl.pallas_call(
            kernel,
            out_shape=jax.ShapeDtypeStruct((B, out_features), jnp.float32),
            in_specs=[
                pl.BlockSpec(memory_space=pltpu.MemorySpace.VMEM),
                pl.BlockSpec(memory_space=pltpu.MemorySpace.VMEM),
                pl.BlockSpec(memory_space=pltpu.MemorySpace.VMEM),
            ],
            out_specs=pl.BlockSpec(memory_space=pltpu.MemorySpace.VMEM),
        )(x, y, wt_pad)

    # Batch-tiled path: stream x/y (double-buffered), keep the small weight
    # resident, shard the batch axis across TensorCores on v7x.
    tb = _choose_batch_tile(B)
    grid = (pl.cdiv(B, tb),)
    return pl.pallas_call(
        kernel,
        out_shape=jax.ShapeDtypeStruct((B, out_features), jnp.float32),
        grid=grid,
        in_specs=[
            pl.BlockSpec((tb, D), lambda i: (i, 0)),
            pl.BlockSpec((tb, D), lambda i: (i, 0)),
            pl.BlockSpec((D, o_pad), lambda i: (0, 0)),
        ],
        out_specs=pl.BlockSpec((tb, out_features), lambda i: (i, 0)),
        compiler_params=pltpu.CompilerParams(
            dimension_semantics=("parallel",),
            vmem_limit_bytes=32 * 1024 * 1024,
        ),
    )(x, y, wt_pad)


if __name__ == "__main__":
    # Deterministic parameters per the module's __init__
    weight = jnp.arange(640, dtype=jnp.float32).reshape(10, 64)
    bias = jnp.zeros((10,), dtype=jnp.float32)  # identically zero for this Net

    # One-time parameter prep (padded / transposed, off the per-call path)
    wt_pad = prepare_params(weight)

    # Deterministic example inputs, same shapes as the reference script
    key = jax.random.PRNGKey(0)
    kx, ky = jax.random.split(key)
    x = jax.random.normal(kx, (32, 64), dtype=jnp.float32)
    y = jax.random.normal(ky, (32, 64), dtype=jnp.float32)

    out = net_forward(x, y, wt_pad, out_features=10)
    out = jax.block_until_ready(out)

    # Cross-check against pure-JAX reference (small / grid-less path)
    ref = (jnp.sin(x) + jnp.cos(y)) @ weight.T + bias
    assert out.shape == (32, 10)
    assert jnp.allclose(out, ref, atol=1e-2, rtol=1e-3)

    # Also exercise the batch-tiled path, including a ragged tail block.
    B2 = 2600
    kx2, ky2 = jax.random.split(jax.random.PRNGKey(1))
    x2 = jax.random.normal(kx2, (B2, 64), dtype=jnp.float32)
    y2 = jax.random.normal(ky2, (B2, 64), dtype=jnp.float32)
    out2 = jax.block_until_ready(net_forward(x2, y2, wt_pad, out_features=10))
    ref2 = (jnp.sin(x2) + jnp.cos(y2)) @ weight.T + bias
    assert out2.shape == (B2, 10)
    assert jnp.allclose(out2, ref2, atol=1e-2, rtol=1e-3)

    print("KERNEL_OK")
</pallas_src>

<mosaic_0001>
module attributes {stable_mosaic.version = 11 : i64} {
  func.func @_net_kernel(%arg0: memref<32x64xf32, #tpu.memory_space<vmem>>, %arg1: memref<32x64xf32, #tpu.memory_space<vmem>>, %arg2: memref<64x128xf32, #tpu.memory_space<vmem>>, %arg3: memref<32x10xf32, #tpu.memory_space<vmem>>) attributes {dimension_semantics = [], scalar_prefetch = 0 : i64, scratch_operands = 0 : i64, tpu.core_type = #tpu.core_type<tc>} {
    %c0 = arith.constant 0 : index
    %c0_0 = arith.constant 0 : index
    %0 = vector.load %arg0[%c0, %c0_0] : memref<32x64xf32, #tpu.memory_space<vmem>>, vector<32x64xf32>
    %1 = math.sin %0 : vector<32x64xf32>
    %c0_1 = arith.constant 0 : index
    %c0_2 = arith.constant 0 : index
    %2 = vector.load %arg1[%c0_1, %c0_2] : memref<32x64xf32, #tpu.memory_space<vmem>>, vector<32x64xf32>
    %3 = math.cos %2 : vector<32x64xf32>
    %4 = arith.addf %1, %3 : vector<32x64xf32>
    %c0_3 = arith.constant 0 : index
    %c0_4 = arith.constant 0 : index
    %5 = vector.load %arg2[%c0_3, %c0_4] : memref<64x128xf32, #tpu.memory_space<vmem>>, vector<64x128xf32>
    %cst = arith.constant dense<0.000000e+00> : vector<32x128xf32>
    %6 = tpu.matmul %4, %5, %cst {dimension_numbers = #tpu.dot_dimension_numbers<[1], [0], [0], [1], [0, 0, 1, 1], [], []>} : vector<32x64xf32>, vector<64x128xf32>, vector<32x128xf32> -> vector<32x128xf32>
    %7 = vector.extract_strided_slice %6 {offsets = [0, 0], sizes = [32, 10], strides = [1, 1]} : vector<32x128xf32> to vector<32x10xf32>
    %c0_5 = arith.constant 0 : index
    %c0_6 = arith.constant 0 : index
    %8 = vector.load %arg3[%c0_5, %c0_6] : memref<32x10xf32, #tpu.memory_space<vmem>>, vector<32x10xf32>
    tpu.vector_store %arg3[%c0_5, %c0_6], %7 {strides = array<i32>} : memref<32x10xf32, #tpu.memory_space<vmem>>, vector<32x10xf32>,
    return
  }
}

</mosaic_0001>

<llo_original>
// kernel: tpu_custom_call.1
$region0: #{tpu_custom_call.1}
  #allocation0 [shape = 'u32[]', space=smem, size = 0x4, offset = 0x4, fixed_abs, tag = 'smem constant byte address 0x4 - core index']
  #allocation1 [shape = 'u32[144,128]{1,0:T(1,128)}', space=vmem, size = 0x12000, scoped, tag = 'internal scratch']
  %s0 = inlined_call_operand.hbm [shape: f32[32,64], index: 0, kind: input, shape index: {}]
  %s1 = inlined_call_operand.hbm [shape: f32[32,64], index: 1, kind: input, shape index: {}]
  %s2 = inlined_call_operand.hbm [shape: f32[64,128], index: 2, kind: input, shape index: {}]
  %s3 = inlined_call_operand.vmem [shape: f32[32,10], index: 3, kind: output, shape index: {}]
  %s4 = sld [smem:[#allocation0]]
  $region34: #{tpu_custom_call.1} parent=0
    _
  %s6 = ssub.s32 1, %s4
  %s7 = scalar_select 0, %s6, %s4
  $region1: #{tpu_custom_call.1} parent=0
    #allocation2 [shape = 'u8[16384]{0}', space=vmem, size = 0x4000, scoped, tag = 'input window, operand 0, single buffered']
    #allocation3 [shape = 's32[1]{0}', space=sflag, size = 0x4, scoped, tag = 'scoped memory for tpu_custom_call.1']
    #allocation4 [shape = 'u8[16384]{0}', space=vmem, size = 0x4000, scoped, tag = 'input window, operand 1, single buffered']
    #allocation5 [shape = 's32[1]{0}', space=sflag, size = 0x4, scoped, tag = 'scoped memory for tpu_custom_call.1']
    #allocation6 [shape = 'u8[32768]{0}', space=vmem, size = 0x8000, scoped, tag = 'input window, operand 2, single buffered']
    %8 = vsyncpa [#allocation3], 0
    %9 = vsyncpa [#allocation5], 0
    // Predicated region
    $region2: #{tpu_custom_call.1} parent=1 // pred_check
      _
    $region3: #{tpu_custom_call.1} parent=1 // pred_check_branch
      %11 = sbr.rel (0) target = $region5
    $region4: #{tpu_custom_call.1} parent=1 // pred_region
      %s13 = ssub.s32 512, 512
      %14 = vsyncadd [#allocation3], %s13
      %s15 = sshll.u32 [#allocation2], 4
      %s16 = int_to_ptr.vmem [resolvable:$true] %s15
      %21 = dma.hbm_to_vmem [thread:$0]  %s0, 512, %s16, [#allocation3], 128, 128, 8
    $region5: #{tpu_custom_call.1} parent=1 // pred_fallthru
      _
    // Predicated region
    $region6: #{tpu_custom_call.1} parent=1 // pred_check
      _
    $region7: #{tpu_custom_call.1} parent=1 // pred_check_branch
      %23 = sbr.rel (0) target = $region9
    $region8: #{tpu_custom_call.1} parent=1 // pred_region
      %s25 = ssub.s32 512, 512
      %26 = vsyncadd [#allocation5], %s25
      %s27 = sshll.u32 [#allocation4], 4
      %s28 = int_to_ptr.vmem [resolvable:$true] %s27
      %33 = dma.hbm_to_vmem [thread:$0]  %s1, 512, %s28, [#allocation5], 128, 128, 8
    $region9: #{tpu_custom_call.1} parent=1 // pred_fallthru
      _
    // Predicated region
    $region10: #{tpu_custom_call.1} parent=1 // pred_check
      _
    $region11: #{tpu_custom_call.1} parent=1 // pred_check_branch
      %35 = sbr.rel (0) target = $region13
    $region12: #{tpu_custom_call.1} parent=1 // pred_region
      %s37 = ssub.s32 1024, 1024
      %38 = vsyncadd [#allocation5], %s37
      %s39 = sshll.u32 [#allocation6], 4
      %s40 = int_to_ptr.vmem [resolvable:$true] %s39
      %45 = dma.hbm_to_vmem [thread:$0]  %s2, 1024, %s40, [#allocation5], 128, 128, 8
    $region13: #{tpu_custom_call.1} parent=1 // pred_fallthru
      _
    // Predicated region
    $region14: #{tpu_custom_call.1} parent=1 // pred_check
      _
    $region15: #{tpu_custom_call.1} parent=1 // pred_check_branch
      %47 = sbr.rel (0) target = $region17
    $region16: #{tpu_custom_call.1} parent=1 // pred_region
      %48 = dma.done [#allocation3], 512
    $region17: #{tpu_custom_call.1} parent=1 // pred_fallthru
      _
    // Predicated region
    $region18: #{tpu_custom_call.1} parent=1 // pred_check
      _
    $region19: #{tpu_custom_call.1} parent=1 // pred_check_branch
      %50 = sbr.rel (0) target = $region21
    $region20: #{tpu_custom_call.1} parent=1 // pred_region
      %51 = dma.done [#allocation5], 512
    $region21: #{tpu_custom_call.1} parent=1 // pred_fallthru
      _
    // Predicated region
    $region22: #{tpu_custom_call.1} parent=1 // pred_check
      _
    $region23: #{tpu_custom_call.1} parent=1 // pred_check_branch
      %53 = sbr.rel (0) target = $region25
    $region24: #{tpu_custom_call.1} parent=1 // pred_region
      %54 = dma.done [#allocation5], 1024
    $region25: #{tpu_custom_call.1} parent=1 // pred_fallthru
      _
    %v55 = vld [vmem:[#allocation2] sm:$0xff]
    %v56 = vld [vmem:[#allocation2 + $0x8] sm:$0xff]
    %v57 = vld [vmem:[#allocation2 + $0x10] sm:$0xff]
    %v58 = vld [vmem:[#allocation2 + $0x18] sm:$0xff]
    %v59 = vand.u32 2147483647, %v55
    %vm60 = vcmp.le.f32.partialorder %v59, 0.7853982
    %vm61 = vcmp.lt.s32.totalorder %v55, 0
    %v62 = vand.u32 %v55, 2139095040
    %v63 = vshrl.u32 %v62, 23
    %v64 = vsub.s32 %v63, 127
    %v65 = vand.u32 2147483647, %v55
    %v66 = vand.u32 %v65, 8388607
    %v67 = vor.u32 %v66, 8388608
    %v68 = vsub.s32 0, %v67
    %v69 = vadd.s32 %v64, 1
    %vm70 = vcmp.gt.s32.totalorder %v69, 0
    %v71 = vsel %vm70, %v69, 0
    %v72 = vshrl.u32 %v71, 5
    %v73 = vand.u32 %v71, 31
    %v74 = vsub.s32 32, %v73
    %v75 = vshrl.u32 683565275, %v74
    %v76 = vshll.u32 683565275, %v73
    %v77 = vshrl.u32 2475754826, %v74
    %v78 = vor.u32 %v76, %v77
    %v79 = vshll.u32 2475754826, %v73
    %v80 = vshrl.u32 2131351028, %v74
    %v81 = vor.u32 %v79, %v80
    %v82 = vshll.u32 2131351028, %v73
    %v83 = vshrl.u32 2102212464, %v74
    %v84 = vor.u32 %v82, %v83
    %v85 = vshll.u32 2102212464, %v73
    %v86 = vshrl.u32 920167782, %v74
    %v87 = vor.u32 %v85, %v86
    %v88 = vshll.u32 920167782, %v73
    %v89 = vshrl.u32 1326507024, %v74
    %v90 = vor.u32 %v88, %v89
    %vm91 = vcmp.lt.s32.totalorder %v72, 1
    %vm92 = vcmp.lt.s32.totalorder %v72, 2
    %vm93 = vcmp.lt.s32.totalorder %v72, 3
    %vm94 = vcmp.lt.s32.totalorder %v72, 4
    %v95 = vsel %vm91, %v75, %v78
    %v96 = vsel %vm94, %v84, 2102212464
    %v97 = vsel %vm93, %v81, %v96
    %v98 = vsel %vm92, %v95, %v97
    %v99 = vsel %vm91, %v78, %v81
    %v100 = vsel %vm94, %v87, 920167782
    %v101 = vsel %vm93, %v84, %v100
    %v102 = vsel %vm92, %v99, %v101
    %v103 = vsel %vm91, %v81, %v84
    %v104 = vsel %vm94, %v90, 1326507024
    %v105 = vsel %vm93, %v87, %v104
    %v106 = vsel %vm92, %v103, %v105
    %v107 = vshll.u32 %v67, 8
    %v108 = vmul.u32.u64.compose %v107, %v106
    %v109 = vextract.low.u32 %v108
    %v110 = vextract.high.u32 %v108
    %v111 = vmul.u32.u64.compose %v107, %v102
    %v112 = vextract.low.u32 %v111
    %v113 = vextract.high.u32 %v111
    %v114 = vmul.u32 %v107, %v98
    %v115 = vadd.s32 %v110, %v112
    %vm116 = vc.u32 %v110, %v112
    %v117 = vadd.s32 %v113, 1
    %v118 = vsel %vm116, %v117, %v113
    %v119 = vadd.s32 %v114, %v118
    %v120 = vadd.s32 %v119, 536870912
    %v121 = vshrl.u32 %v120, 30
    %v122 = vshll.u32 %v121, 30
    %v123 = vsub.s32 %v119, %v122
    %vm124 = vcmp.lt.s32.totalorder %v123, 0
    %v125 = vsub.s32 0, %v123
    %v126 = vsel %vm124, %v125, %v123
    %v127 = vclz %v126
    %v128 = vsub.s32 %v127, 2
    %vm129 = vcmp.gt.s32.totalorder 0, %v128
    %v130 = vsel %vm129, 0, %v128
    %v131 = vsub.s32 32, %v130
    %v132 = vshll.u32 %v123, %v130
    %v133 = vshrl.u32 %v115, %v131
    %v134 = vor.u32 %v132, %v133
    %v135 = vsub.s32 4294967266, %v130
    %v136 = vadd.s32 %v135, 127
    %v137 = vshll.u32 %v136, 23
    %v138 = vor.u32 4788187, %v137
    %v139 = vand.u32 2147483647, %v138
    %v141 = vcvt.s32.f32 %v134
    %v142 = vmul.f32 %v141, %v139
    %v143 = vxor.u32 %v142, 2147483648
    %v144 = vsel %vm61, %v143, %v142
    %v145 = vsub.s32 4, %v121
    %v146 = vsel %vm61, %v145, %v121
    %v147 = vsel %vm60, %v55, %v144
    %v148 = vsel %vm60, 0, %v146
    %v149 = vcosq.f32.pop %v147
    %v150 = vsinq.f32.pop %v147
    %vm151 = vweird.f32 %v55
    %v152 = vadd.s32 %v148, 3
    %v153 = vand.u32 %v152, 3
    %vm154 = vcmp.lt.s32.totalorder %v153, 2
    %vm155 = vcmp.eq.s32.totalorder %v153, 0
    %v156 = vxor.u32 %v150, 2147483648
    %v157 = vsel %vm155, %v149, %v156
    %vm158 = vcmp.eq.s32.totalorder %v153, 2
    %v159 = vxor.u32 %v149, 2147483648
    %v160 = vsel %vm158, %v159, %v150
    %v161 = vsel %vm154, %v157, %v160
    %v162 = vsel %vm151, nan, %v161
    %v163 = vand.u32 2147483647, %v56
    %vm164 = vcmp.le.f32.partialorder %v163, 0.7853982
    %vm165 = vcmp.lt.s32.totalorder %v56, 0
    %v166 = vand.u32 %v56, 2139095040
    %v167 = vshrl.u32 %v166, 23
    %v168 = vsub.s32 %v167, 127
    %v169 = vand.u32 2147483647, %v56
    %v170 = vand.u32 %v169, 8388607
    %v171 = vor.u32 %v170, 8388608
    %v172 = vsub.s32 0, %v171
    %v173 = vadd.s32 %v168, 1
    %vm174 = vcmp.gt.s32.totalorder %v173, 0
    %v175 = vsel %vm174, %v173, 0
    %v176 = vshrl.u32 %v175, 5
    %v177 = vand.u32 %v175, 31
    %v178 = vsub.s32 32, %v177
    %v179 = vshrl.u32 683565275, %v178
    %v180 = vshll.u32 683565275, %v177
    %v181 = vshrl.u32 2475754826, %v178
    %v182 = vor.u32 %v180, %v181
    %v183 = vshll.u32 2475754826, %v177
    %v184 = vshrl.u32 2131351028, %v178
    %v185 = vor.u32 %v183, %v184
    %v186 = vshll.u32 2131351028, %v177
    %v187 = vshrl.u32 2102212464, %v178
    %v188 = vor.u32 %v186, %v187
    %v189 = vshll.u32 2102212464, %v177
    %v190 = vshrl.u32 920167782, %v178
    %v191 = vor.u32 %v189, %v190
    %v192 = vshll.u32 920167782, %v177
    %v193 = vshrl.u32 1326507024, %v178
    %v194 = vor.u32 %v192, %v193
    %vm195 = vcmp.lt.s32.totalorder %v176, 1
    %vm196 = vcmp.lt.s32.totalorder %v176, 2
    %vm197 = vcmp.lt.s32.totalorder %v176, 3
    %vm198 = vcmp.lt.s32.totalorder %v176, 4
    %v199 = vsel %vm195, %v179, %v182
    %v200 = vsel %vm198, %v188, 2102212464
    %v201 = vsel %vm197, %v185, %v200
    %v202 = vsel %vm196, %v199, %v201
    %v203 = vsel %vm195, %v182, %v185
    %v204 = vsel %vm198, %v191, 920167782
    %v205 = vsel %vm197, %v188, %v204
    %v206 = vsel %vm196, %v203, %v205
    %v207 = vsel %vm195, %v185, %v188
    %v208 = vsel %vm198, %v194, 1326507024
    %v209 = vsel %vm197, %v191, %v208
    %v210 = vsel %vm196, %v207, %v209
    %v211 = vshll.u32 %v171, 8
    %v212 = vmul.u32.u64.compose %v211, %v210
    %v213 = vextract.low.u32 %v212
    %v214 = vextract.high.u32 %v212
    %v215 = vmul.u32.u64.compose %v211, %v206
    %v216 = vextract.low.u32 %v215
    %v217 = vextract.high.u32 %v215
    %v218 = vmul.u32 %v211, %v202
    %v219 = vadd.s32 %v214, %v216
    %vm220 = vc.u32 %v214, %v216
    %v221 = vadd.s32 %v217, 1
    %v222 = vsel %vm220, %v221, %v217
    %v223 = vadd.s32 %v218, %v222
    %v224 = vadd.s32 %v223, 536870912
    %v225 = vshrl.u32 %v224, 30
    %v226 = vshll.u32 %v225, 30
    %v227 = vsub.s32 %v223, %v226
    %vm228 = vcmp.lt.s32.totalorder %v227, 0
    %v229 = vsub.s32 0, %v227
    %v230 = vsel %vm228, %v229, %v227
    %v231 = vclz %v230
    %v232 = vsub.s32 %v231, 2
    %vm233 = vcmp.gt.s32.totalorder 0, %v232
    %v234 = vsel %vm233, 0, %v232
    %v235 = vsub.s32 32, %v234
    %v236 = vshll.u32 %v227, %v234
    %v237 = vshrl.u32 %v219, %v235
    %v238 = vor.u32 %v236, %v237
    %v239 = vsub.s32 4294967266, %v234
    %v240 = vadd.s32 %v239, 127
    %v241 = vshll.u32 %v240, 23
    %v242 = vor.u32 4788187, %v241
    %v243 = vand.u32 2147483647, %v242
    %v245 = vcvt.s32.f32 %v238
    %v246 = vmul.f32 %v245, %v243
    %v247 = vxor.u32 %v246, 2147483648
    %v248 = vsel %vm165, %v247, %v246
    %v249 = vsub.s32 4, %v225
    %v250 = vsel %vm165, %v249, %v225
    %v251 = vsel %vm164, %v56, %v248
    %v252 = vsel %vm164, 0, %v250
    %v253 = vcosq.f32.pop %v251
    %v254 = vsinq.f32.pop %v251
    %vm255 = vweird.f32 %v56
    %v256 = vadd.s32 %v252, 3
    %v257 = vand.u32 %v256, 3
    %vm258 = vcmp.lt.s32.totalorder %v257, 2
    %vm259 = vcmp.eq.s32.totalorder %v257, 0
    %v260 = vxor.u32 %v254, 2147483648
    %v261 = vsel %vm259, %v253, %v260
    %vm262 = vcmp.eq.s32.totalorder %v257, 2
    %v263 = vxor.u32 %v253, 2147483648
    %v264 = vsel %vm262, %v263, %v254
    %v265 = vsel %vm258, %v261, %v264
    %v266 = vsel %vm255, nan, %v265
    %v267 = vand.u32 2147483647, %v57
    %vm268 = vcmp.le.f32.partialorder %v267, 0.7853982
    %vm269 = vcmp.lt.s32.totalorder %v57, 0
    %v270 = vand.u32 %v57, 2139095040
    %v271 = vshrl.u32 %v270, 23
    %v272 = vsub.s32 %v271, 127
    %v273 = vand.u32 2147483647, %v57
    %v274 = vand.u32 %v273, 8388607
    %v275 = vor.u32 %v274, 8388608
    %v276 = vsub.s32 0, %v275
    %v277 = vadd.s32 %v272, 1
    %vm278 = vcmp.gt.s32.totalorder %v277, 0
    %v279 = vsel %vm278, %v277, 0
    %v280 = vshrl.u32 %v279, 5
    %v281 = vand.u32 %v279, 31
    %v282 = vsub.s32 32, %v281
    %v283 = vshrl.u32 683565275, %v282
    %v284 = vshll.u32 683565275, %v281
    %v285 = vshrl.u32 2475754826, %v282
    %v286 = vor.u32 %v284, %v285
    %v287 = vshll.u32 2475754826, %v281
    %v288 = vshrl.u32 2131351028, %v282
    %v289 = vor.u32 %v287, %v288
    %v290 = vshll.u32 2131351028, %v281
    %v291 = vshrl.u32 2102212464, %v282
    %v292 = vor.u32 %v290, %v291
    %v293 = vshll.u32 2102212464, %v281
    %v294 = vshrl.u32 920167782, %v282
    %v295 = vor.u32 %v293, %v294
    %v296 = vshll.u32 920167782, %v281
    %v297 = vshrl.u32 1326507024, %v282
    %v298 = vor.u32 %v296, %v297
    %vm299 = vcmp.lt.s32.totalorder %v280, 1
    %vm300 = vcmp.lt.s32.totalorder %v280, 2
    %vm301 = vcmp.lt.s32.totalorder %v280, 3
    %vm302 = vcmp.lt.s32.totalorder %v280, 4
    %v303 = vsel %vm299, %v283, %v286
    %v304 = vsel %vm302, %v292, 2102212464
    %v305 = vsel %vm301, %v289, %v304
    %v306 = vsel %vm300, %v303, %v305
    %v307 = vsel %vm299, %v286, %v289
    %v308 = vsel %vm302, %v295, 920167782
    %v309 = vsel %vm301, %v292, %v308
    %v310 = vsel %vm300, %v307, %v309
    %v311 = vsel %vm299, %v289, %v292
    %v312 = vsel %vm302, %v298, 1326507024
    %v313 = vsel %vm301, %v295, %v312
    %v314 = vsel %vm300, %v311, %v313
    %v315 = vshll.u32 %v275, 8
    %v316 = vmul.u32.u64.compose %v315, %v314
    %v317 = vextract.low.u32 %v316
    %v318 = vextract.high.u32 %v316
    %v319 = vmul.u32.u64.compose %v315, %v310
    %v320 = vextract.low.u32 %v319
    %v321 = vextract.high.u32 %v319
    %v322 = vmul.u32 %v315, %v306
    %v323 = vadd.s32 %v318, %v320
    %vm324 = vc.u32 %v318, %v320
    %v325 = vadd.s32 %v321, 1
    %v326 = vsel %vm324, %v325, %v321
    %v327 = vadd.s32 %v322, %v326
    %v328 = vadd.s32 %v327, 536870912
    %v329 = vshrl.u32 %v328, 30
    %v330 = vshll.u32 %v329, 30
    %v331 = vsub.s32 %v327, %v330
    %vm332 = vcmp.lt.s32.totalorder %v331, 0
    %v333 = vsub.s32 0, %v331
    %v334 = vsel %vm332, %v333, %v331
    %v335 = vclz %v334
    %v336 = vsub.s32 %v335, 2
    %vm337 = vcmp.gt.s32.totalorder 0, %v336
    %v338 = vsel %vm337, 0, %v336
    %v339 = vsub.s32 32, %v338
    %v340 = vshll.u32 %v331, %v338
    %v341 = vshrl.u32 %v323, %v339
    %v342 = vor.u32 %v340, %v341
    %v343 = vsub.s32 4294967266, %v338
    %v344 = vadd.s32 %v343, 127
    %v345 = vshll.u32 %v344, 23
    %v346 = vor.u32 4788187, %v345
    %v347 = vand.u32 2147483647, %v346
    %v349 = vcvt.s32.f32 %v342
    %v350 = vmul.f32 %v349, %v347
    %v351 = vxor.u32 %v350, 2147483648
    %v352 = vsel %vm269, %v351, %v350
    %v353 = vsub.s32 4, %v329
    %v354 = vsel %vm269, %v353, %v329
    %v355 = vsel %vm268, %v57, %v352
    %v356 = vsel %vm268, 0, %v354
    %v357 = vcosq.f32.pop %v355
    %v358 = vsinq.f32.pop %v355
    %vm359 = vweird.f32 %v57
    %v360 = vadd.s32 %v356, 3
    %v361 = vand.u32 %v360, 3
    %vm362 = vcmp.lt.s32.totalorder %v361, 2
    %vm363 = vcmp.eq.s32.totalorder %v361, 0
    %v364 = vxor.u32 %v358, 2147483648
    %v365 = vsel %vm363, %v357, %v364
    %vm366 = vcmp.eq.s32.totalorder %v361, 2
    %v367 = vxor.u32 %v357, 2147483648
    %v368 = vsel %vm366, %v367, %v358
    %v369 = vsel %vm362, %v365, %v368
    %v370 = vsel %vm359, nan, %v369
    %v371 = vand.u32 2147483647, %v58
    %vm372 = vcmp.le.f32.partialorder %v371, 0.7853982
    %vm373 = vcmp.lt.s32.totalorder %v58, 0
    %v374 = vand.u32 %v58, 2139095040
    %v375 = vshrl.u32 %v374, 23
    %v376 = vsub.s32 %v375, 127
    %v377 = vand.u32 2147483647, %v58
    %v378 = vand.u32 %v377, 8388607
    %v379 = vor.u32 %v378, 8388608
    %v380 = vsub.s32 0, %v379
    %v381 = vadd.s32 %v376, 1
    %vm382 = vcmp.gt.s32.totalorder %v381, 0
    %v383 = vsel %vm382, %v381, 0
    %v384 = vshrl.u32 %v383, 5
    %v385 = vand.u32 %v383, 31
    %v386 = vsub.s32 32, %v385
    %v387 = vshrl.u32 683565275, %v386
    %v388 = vshll.u32 683565275, %v385
    %v389 = vshrl.u32 2475754826, %v386
    %v390 = vor.u32 %v388, %v389
    %v391 = vshll.u32 2475754826, %v385
    %v392 = vshrl.u32 2131351028, %v386
    %v393 = vor.u32 %v391, %v392
    %v394 = vshll.u32 2131351028, %v385
    %v395 = vshrl.u32 2102212464, %v386
    %v396 = vor.u32 %v394, %v395
    %v397 = vshll.u32 2102212464, %v385
    %v398 = vshrl.u32 920167782, %v386
    %v399 = vor.u32 %v397, %v398
    %v400 = vshll.u32 920167782, %v385
    %v401 = vshrl.u32 1326507024, %v386
    %v402 = vor.u32 %v400, %v401
    %vm403 = vcmp.lt.s32.totalorder %v384, 1
    %vm404 = vcmp.lt.s32.totalorder %v384, 2
    %vm405 = vcmp.lt.s32.totalorder %v384, 3
    %vm406 = vcmp.lt.s32.totalorder %v384, 4
    %v407 = vsel %vm403, %v387, %v390
    %v408 = vsel %vm406, %v396, 2102212464
    %v409 = vsel %vm405, %v393, %v408
    %v410 = vsel %vm404, %v407, %v409
    %v411 = vsel %vm403, %v390, %v393
    %v412 = vsel %vm406, %v399, 920167782
    %v413 = vsel %vm405, %v396, %v412
    %v414 = vsel %vm404, %v411, %v413
    %v415 = vsel %vm403, %v393, %v396
    %v416 = vsel %vm406, %v402, 1326507024
    %v417 = vsel %vm405, %v399, %v416
    %v418 = vsel %vm404, %v415, %v417
    %v419 = vshll.u32 %v379, 8
    %v420 = vmul.u32.u64.compose %v419, %v418
    %v421 = vextract.low.u32 %v420
    %v422 = vextract.high.u32 %v420
    %v423 = vmul.u32.u64.compose %v419, %v414
    %v424 = vextract.low.u32 %v423
    %v425 = vextract.high.u32 %v423
    %v426 = vmul.u32 %v419, %v410
    %v427 = vadd.s32 %v422, %v424
    %vm428 = vc.u32 %v422, %v424
    %v429 = vadd.s32 %v425, 1
    %v430 = vsel %vm428, %v429, %v425
    %v431 = vadd.s32 %v426, %v430
    %v432 = vadd.s32 %v431, 536870912
    %v433 = vshrl.u32 %v432, 30
    %v434 = vshll.u32 %v433, 30
    %v435 = vsub.s32 %v431, %v434
    %vm436 = vcmp.lt.s32.totalorder %v435, 0
    %v437 = vsub.s32 0, %v435
    %v438 = vsel %vm436, %v437, %v435
    %v439 = vclz %v438
    %v440 = vsub.s32 %v439, 2
    %vm441 = vcmp.gt.s32.totalorder 0, %v440
    %v442 = vsel %vm441, 0, %v440
    %v443 = vsub.s32 32, %v442
    %v444 = vshll.u32 %v435, %v442
    %v445 = vshrl.u32 %v427, %v443
    %v446 = vor.u32 %v444, %v445
    %v447 = vsub.s32 4294967266, %v442
    %v448 = vadd.s32 %v447, 127
    %v449 = vshll.u32 %v448, 23
    %v450 = vor.u32 4788187, %v449
    %v451 = vand.u32 2147483647, %v450
    %v453 = vcvt.s32.f32 %v446
    %v454 = vmul.f32 %v453, %v451
    %v455 = vxor.u32 %v454, 2147483648
    %v456 = vsel %vm373, %v455, %v454
    %v457 = vsub.s32 4, %v433
    %v458 = vsel %vm373, %v457, %v433
    %v459 = vsel %vm372, %v58, %v456
    %v460 = vsel %vm372, 0, %v458
    %v461 = vcosq.f32.pop %v459
    %v462 = vsinq.f32.pop %v459
    %vm463 = vweird.f32 %v58
    %v464 = vadd.s32 %v460, 3
    %v465 = vand.u32 %v464, 3
    %vm466 = vcmp.lt.s32.totalorder %v465, 2
    %vm467 = vcmp.eq.s32.totalorder %v465, 0
    %v468 = vxor.u32 %v462, 2147483648
    %v469 = vsel %vm467, %v461, %v468
    %vm470 = vcmp.eq.s32.totalorder %v465, 2
    %v471 = vxor.u32 %v461, 2147483648
    %v472 = vsel %vm470, %v471, %v462
    %v473 = vsel %vm466, %v469, %v472
    %v474 = vsel %vm463, nan, %v473
    %v475 = vld [vmem:[#allocation4] sm:$0xff]
    %v476 = vld [vmem:[#allocation4 + $0x8] sm:$0xff]
    %v477 = vld [vmem:[#allocation4 + $0x10] sm:$0xff]
    %v478 = vld [vmem:[#allocation4 + $0x18] sm:$0xff]
    %v479 = vand.u32 2147483647, %v475
    %vm480 = vcmp.le.f32.partialorder %v479, 0.7853982
    %vm481 = vcmp.lt.s32.totalorder %v475, 0
    %v482 = vand.u32 %v475, 2139095040
    %v483 = vshrl.u32 %v482, 23
    %v484 = vsub.s32 %v483, 127
    %v485 = vand.u32 2147483647, %v475
    %v486 = vand.u32 %v485, 8388607
    %v487 = vor.u32 %v486, 8388608
    %v488 = vsub.s32 0, %v487
    %v489 = vadd.s32 %v484, 1
    %vm490 = vcmp.gt.s32.totalorder %v489, 0
    %v491 = vsel %vm490, %v489, 0
    %v492 = vshrl.u32 %v491, 5
    %v493 = vand.u32 %v491, 31
    %v494 = vsub.s32 32, %v493
    %v495 = vshrl.u32 683565275, %v494
    %v496 = vshll.u32 683565275, %v493
    %v497 = vshrl.u32 2475754826, %v494
    %v498 = vor.u32 %v496, %v497
    %v499 = vshll.u32 2475754826, %v493
    %v500 = vshrl.u32 2131351028, %v494
    %v501 = vor.u32 %v499, %v500
    %v502 = vshll.u32 2131351028, %v493
    %v503 = vshrl.u32 2102212464, %v494
    %v504 = vor.u32 %v502, %v503
    %v505 = vshll.u32 2102212464, %v493
    %v506 = vshrl.u32 920167782, %v494
    %v507 = vor.u32 %v505, %v506
    %v508 = vshll.u32 920167782, %v493
    %v509 = vshrl.u32 1326507024, %v494
    %v510 = vor.u32 %v508, %v509
    %vm511 = vcmp.lt.s32.totalorder %v492, 1
    %vm512 = vcmp.lt.s32.totalorder %v492, 2
    %vm513 = vcmp.lt.s32.totalorder %v492, 3
    %vm514 = vcmp.lt.s32.totalorder %v492, 4
    %v515 = vsel %vm511, %v495, %v498
    %v516 = vsel %vm514, %v504, 2102212464
    %v517 = vsel %vm513, %v501, %v516
    %v518 = vsel %vm512, %v515, %v517
    %v519 = vsel %vm511, %v498, %v501
    %v520 = vsel %vm514, %v507, 920167782
    %v521 = vsel %vm513, %v504, %v520
    %v522 = vsel %vm512, %v519, %v521
    %v523 = vsel %vm511, %v501, %v504
    %v524 = vsel %vm514, %v510, 1326507024
    %v525 = vsel %vm513, %v507, %v524
    %v526 = vsel %vm512, %v523, %v525
    %v527 = vshll.u32 %v487, 8
    %v528 = vmul.u32.u64.compose %v527, %v526
    %v529 = vextract.low.u32 %v528
    %v530 = vextract.high.u32 %v528
    %v531 = vmul.u32.u64.compose %v527, %v522
    %v532 = vextract.low.u32 %v531
    %v533 = vextract.high.u32 %v531
    %v534 = vmul.u32 %v527, %v518
    %v535 = vadd.s32 %v530, %v532
    %vm536 = vc.u32 %v530, %v532
    %v537 = vadd.s32 %v533, 1
    %v538 = vsel %vm536, %v537, %v533
    %v539 = vadd.s32 %v534, %v538
    %v540 = vadd.s32 %v539, 536870912
    %v541 = vshrl.u32 %v540, 30
    %v542 = vshll.u32 %v541, 30
    %v543 = vsub.s32 %v539, %v542
    %vm544 = vcmp.lt.s32.totalorder %v543, 0
    %v545 = vsub.s32 0, %v543
    %v546 = vsel %vm544, %v545, %v543
    %v547 = vclz %v546
    %v548 = vsub.s32 %v547, 2
    %vm549 = vcmp.gt.s32.totalorder 0, %v548
    %v550 = vsel %vm549, 0, %v548
    %v551 = vsub.s32 32, %v550
    %v552 = vshll.u32 %v543, %v550
    %v553 = vshrl.u32 %v535, %v551
    %v554 = vor.u32 %v552, %v553
    %v555 = vsub.s32 4294967266, %v550
    %v556 = vadd.s32 %v555, 127
    %v557 = vshll.u32 %v556, 23
    %v558 = vor.u32 4788187, %v557
    %v559 = vand.u32 2147483647, %v558
    %v561 = vcvt.s32.f32 %v554
    %v562 = vmul.f32 %v561, %v559
    %v563 = vxor.u32 %v562, 2147483648
    %v564 = vsel %vm481, %v563, %v562
    %v565 = vsub.s32 4, %v541
    %v566 = vsel %vm481, %v565, %v541
    %v567 = vsel %vm480, %v475, %v564
    %v568 = vsel %vm480, 0, %v566
    %v569 = vcosq.f32.pop %v567
    %v570 = vsinq.f32.pop %v567
    %vm571 = vweird.f32 %v475
    %v572 = vand.u32 %v568, 3
    %vm573 = vcmp.lt.s32.totalorder %v572, 2
    %vm574 = vcmp.eq.s32.totalorder %v572, 0
    %v575 = vxor.u32 %v570, 2147483648
    %v576 = vsel %vm574, %v569, %v575
    %vm577 = vcmp.eq.s32.totalorder %v572, 2
    %v578 = vxor.u32 %v569, 2147483648
    %v579 = vsel %vm577, %v578, %v570
    %v580 = vsel %vm573, %v576, %v579
    %v581 = vsel %vm571, nan, %v580
    %v582 = vand.u32 2147483647, %v476
    %vm583 = vcmp.le.f32.partialorder %v582, 0.7853982
    %vm584 = vcmp.lt.s32.totalorder %v476, 0
    %v585 = vand.u32 %v476, 2139095040
    %v586 = vshrl.u32 %v585, 23
    %v587 = vsub.s32 %v586, 127
    %v588 = vand.u32 2147483647, %v476
    %v589 = vand.u32 %v588, 8388607
    %v590 = vor.u32 %v589, 8388608
    %v591 = vsub.s32 0, %v590
    %v592 = vadd.s32 %v587, 1
    %vm593 = vcmp.gt.s32.totalorder %v592, 0
    %v594 = vsel %vm593, %v592, 0
    %v595 = vshrl.u32 %v594, 5
    %v596 = vand.u32 %v594, 31
    %v597 = vsub.s32 32, %v596
    %v598 = vshrl.u32 683565275, %v597
    %v599 = vshll.u32 683565275, %v596
    %v600 = vshrl.u32 2475754826, %v597
    %v601 = vor.u32 %v599, %v600
    %v602 = vshll.u32 2475754826, %v596
    %v603 = vshrl.u32 2131351028, %v597
    %v604 = vor.u32 %v602, %v603
    %v605 = vshll.u32 2131351028, %v596
    %v606 = vshrl.u32 2102212464, %v597
    %v607 = vor.u32 %v605, %v606
    %v608 = vshll.u32 2102212464, %v596
    %v609 = vshrl.u32 920167782, %v597
    %v610 = vor.u32 %v608, %v609
    %v611 = vshll.u32 920167782, %v596
    %v612 = vshrl.u32 1326507024, %v597
    %v613 = vor.u32 %v611, %v612
    %vm614 = vcmp.lt.s32.totalorder %v595, 1
    %vm615 = vcmp.lt.s32.totalorder %v595, 2
    %vm616 = vcmp.lt.s32.totalorder %v595, 3
    %vm617 = vcmp.lt.s32.totalorder %v595, 4
    %v618 = vsel %vm614, %v598, %v601
    %v619 = vsel %vm617, %v607, 2102212464
    %v620 = vsel %vm616, %v604, %v619
    %v621 = vsel %vm615, %v618, %v620
    %v622 = vsel %vm614, %v601, %v604
    %v623 = vsel %vm617, %v610, 920167782
    %v624 = vsel %vm616, %v607, %v623
    %v625 = vsel %vm615, %v622, %v624
    %v626 = vsel %vm614, %v604, %v607
    %v627 = vsel %vm617, %v613, 1326507024
    %v628 = vsel %vm616, %v610, %v627
    %v629 = vsel %vm615, %v626, %v628
    %v630 = vshll.u32 %v590, 8
    %v631 = vmul.u32.u64.compose %v630, %v629
    %v632 = vextract.low.u32 %v631
    %v633 = vextract.high.u32 %v631
    %v634 = vmul.u32.u64.compose %v630, %v625
    %v635 = vextract.low.u32 %v634
    %v636 = vextract.high.u32 %v634
    %v637 = vmul.u32 %v630, %v621
    %v638 = vadd.s32 %v633, %v635
    %vm639 = vc.u32 %v633, %v635
    %v640 = vadd.s32 %v636, 1
    %v641 = vsel %vm639, %v640, %v636
    %v642 = vadd.s32 %v637, %v641
    %v643 = vadd.s32 %v642, 536870912
    %v644 = vshrl.u32 %v643, 30
    %v645 = vshll.u32 %v644, 30
    %v646 = vsub.s32 %v642, %v645
    %vm647 = vcmp.lt.s32.totalorder %v646, 0
    %v648 = vsub.s32 0, %v646
    %v649 = vsel %vm647, %v648, %v646
    %v650 = vclz %v649
    %v651 = vsub.s32 %v650, 2
    %vm652 = vcmp.gt.s32.totalorder 0, %v651
    %v653 = vsel %vm652, 0, %v651
    %v654 = vsub.s32 32, %v653
    %v655 = vshll.u32 %v646, %v653
    %v656 = vshrl.u32 %v638, %v654
    %v657 = vor.u32 %v655, %v656
    %v658 = vsub.s32 4294967266, %v653
    %v659 = vadd.s32 %v658, 127
    %v660 = vshll.u32 %v659, 23
    %v661 = vor.u32 4788187, %v660
    %v662 = vand.u32 2147483647, %v661
    %v664 = vcvt.s32.f32 %v657
    %v665 = vmul.f32 %v664, %v662
    %v666 = vxor.u32 %v665, 2147483648
    %v667 = vsel %vm584, %v666, %v665
    %v668 = vsub.s32 4, %v644
    %v669 = vsel %vm584, %v668, %v644
    %v670 = vsel %vm583, %v476, %v667
    %v671 = vsel %vm583, 0, %v669
    %v672 = vcosq.f32.pop %v670
    %v673 = vsinq.f32.pop %v670
    %vm674 = vweird.f32 %v476
    %v675 = vand.u32 %v671, 3
    %vm676 = vcmp.lt.s32.totalorder %v675, 2
    %vm677 = vcmp.eq.s32.totalorder %v675, 0
    %v678 = vxor.u32 %v673, 2147483648
    %v679 = vsel %vm677, %v672, %v678
    %vm680 = vcmp.eq.s32.totalorder %v675, 2
    %v681 = vxor.u32 %v672, 2147483648
    %v682 = vsel %vm680, %v681, %v673
    %v683 = vsel %vm676, %v679, %v682
    %v684 = vsel %vm674, nan, %v683
    %v685 = vand.u32 2147483647, %v477
    %vm686 = vcmp.le.f32.partialorder %v685, 0.7853982
    %vm687 = vcmp.lt.s32.totalorder %v477, 0
    %v688 = vand.u32 %v477, 2139095040
    %v689 = vshrl.u32 %v688, 23
    %v690 = vsub.s32 %v689, 127
    %v691 = vand.u32 2147483647, %v477
    %v692 = vand.u32 %v691, 8388607
    %v693 = vor.u32 %v692, 8388608
    %v694 = vsub.s32 0, %v693
    %v695 = vadd.s32 %v690, 1
    %vm696 = vcmp.gt.s32.totalorder %v695, 0
    %v697 = vsel %vm696, %v695, 0
    %v698 = vshrl.u32 %v697, 5
    %v699 = vand.u32 %v697, 31
    %v700 = vsub.s32 32, %v699
    %v701 = vshrl.u32 683565275, %v700
    %v702 = vshll.u32 683565275, %v699
    %v703 = vshrl.u32 2475754826, %v700
    %v704 = vor.u32 %v702, %v703
    %v705 = vshll.u32 2475754826, %v699
    %v706 = vshrl.u32 2131351028, %v700
    %v707 = vor.u32 %v705, %v706
    %v708 = vshll.u32 2131351028, %v699
    %v709 = vshrl.u32 2102212464, %v700
    %v710 = vor.u32 %v708, %v709
    %v711 = vshll.u32 2102212464, %v699
    %v712 = vshrl.u32 920167782, %v700
    %v713 = vor.u32 %v711, %v712
    %v714 = vshll.u32 920167782, %v699
    %v715 = vshrl.u32 1326507024, %v700
    %v716 = vor.u32 %v714, %v715
    %vm717 = vcmp.lt.s32.totalorder %v698, 1
    %vm718 = vcmp.lt.s32.totalorder %v698, 2
    %vm719 = vcmp.lt.s32.totalorder %v698, 3
    %vm720 = vcmp.lt.s32.totalorder %v698, 4
    %v721 = vsel %vm717, %v701, %v704
    %v722 = vsel %vm720, %v710, 2102212464
    %v723 = vsel %vm719, %v707, %v722
    %v724 = vsel %vm718, %v721, %v723
    %v725 = vsel %vm717, %v704, %v707
    %v726 = vsel %vm720, %v713, 920167782
    %v727 = vsel %vm719, %v710, %v726
    %v728 = vsel %vm718, %v725, %v727
    %v729 = vsel %vm717, %v707, %v710
    %v730 = vsel %vm720, %v716, 1326507024
    %v731 = vsel %vm719, %v713, %v730
    %v732 = vsel %vm718, %v729, %v731
    %v733 = vshll.u32 %v693, 8
    %v734 = vmul.u32.u64.compose %v733, %v732
    %v735 = vextract.low.u32 %v734
    %v736 = vextract.high.u32 %v734
    %v737 = vmul.u32.u64.compose %v733, %v728
    %v738 = vextract.low.u32 %v737
    %v739 = vextract.high.u32 %v737
    %v740 = vmul.u32 %v733, %v724
    %v741 = vadd.s32 %v736, %v738
    %vm742 = vc.u32 %v736, %v738
    %v743 = vadd.s32 %v739, 1
    %v744 = vsel %vm742, %v743, %v739
    %v745 = vadd.s32 %v740, %v744
    %v746 = vadd.s32 %v745, 536870912
    %v747 = vshrl.u32 %v746, 30
    %v748 = vshll.u32 %v747, 30
    %v749 = vsub.s32 %v745, %v748
    %vm750 = vcmp.lt.s32.totalorder %v749, 0
    %v751 = vsub.s32 0, %v749
    %v752 = vsel %vm750, %v751, %v749
    %v753 = vclz %v752
    %v754 = vsub.s32 %v753, 2
    %vm755 = vcmp.gt.s32.totalorder 0, %v754
    %v756 = vsel %vm755, 0, %v754
    %v757 = vsub.s32 32, %v756
    %v758 = vshll.u32 %v749, %v756
    %v759 = vshrl.u32 %v741, %v757
    %v760 = vor.u32 %v758, %v759
    %v761 = vsub.s32 4294967266, %v756
    %v762 = vadd.s32 %v761, 127
    %v763 = vshll.u32 %v762, 23
    %v764 = vor.u32 4788187, %v763
    %v765 = vand.u32 2147483647, %v764
    %v767 = vcvt.s32.f32 %v760
    %v768 = vmul.f32 %v767, %v765
    %v769 = vxor.u32 %v768, 2147483648
    %v770 = vsel %vm687, %v769, %v768
    %v771 = vsub.s32 4, %v747
    %v772 = vsel %vm687, %v771, %v747
    %v773 = vsel %vm686, %v477, %v770
    %v774 = vsel %vm686, 0, %v772
    %v775 = vcosq.f32.pop %v773
    %v776 = vsinq.f32.pop %v773
    %vm777 = vweird.f32 %v477
    %v778 = vand.u32 %v774, 3
    %vm779 = vcmp.lt.s32.totalorder %v778, 2
    %vm780 = vcmp.eq.s32.totalorder %v778, 0
    %v781 = vxor.u32 %v776, 2147483648
    %v782 = vsel %vm780, %v775, %v781
    %vm783 = vcmp.eq.s32.totalorder %v778, 2
    %v784 = vxor.u32 %v775, 2147483648
    %v785 = vsel %vm783, %v784, %v776
    %v786 = vsel %vm779, %v782, %v785
    %v787 = vsel %vm777, nan, %v786
    %v788 = vand.u32 2147483647, %v478
    %vm789 = vcmp.le.f32.partialorder %v788, 0.7853982
    %vm790 = vcmp.lt.s32.totalorder %v478, 0
    %v791 = vand.u32 %v478, 2139095040
    %v792 = vshrl.u32 %v791, 23
    %v793 = vsub.s32 %v792, 127
    %v794 = vand.u32 2147483647, %v478
    %v795 = vand.u32 %v794, 8388607
    %v796 = vor.u32 %v795, 8388608
    %v797 = vsub.s32 0, %v796
    %v798 = vadd.s32 %v793, 1
    %vm799 = vcmp.gt.s32.totalorder %v798, 0
    %v800 = vsel %vm799, %v798, 0
    %v801 = vshrl.u32 %v800, 5
    %v802 = vand.u32 %v800, 31
    %v803 = vsub.s32 32, %v802
    %v804 = vshrl.u32 683565275, %v803
    %v805 = vshll.u32 683565275, %v802
    %v806 = vshrl.u32 2475754826, %v803
    %v807 = vor.u32 %v805, %v806
    %v808 = vshll.u32 2475754826, %v802
    %v809 = vshrl.u32 2131351028, %v803
    %v810 = vor.u32 %v808, %v809
    %v811 = vshll.u32 2131351028, %v802
    %v812 = vshrl.u32 2102212464, %v803
    %v813 = vor.u32 %v811, %v812
    %v814 = vshll.u32 2102212464, %v802
    %v815 = vshrl.u32 920167782, %v803
    %v816 = vor.u32 %v814, %v815
    %v817 = vshll.u32 920167782, %v802
    %v818 = vshrl.u32 1326507024, %v803
    %v819 = vor.u32 %v817, %v818
    %vm820 = vcmp.lt.s32.totalorder %v801, 1
    %vm821 = vcmp.lt.s32.totalorder %v801, 2
    %vm822 = vcmp.lt.s32.totalorder %v801, 3
    %vm823 = vcmp.lt.s32.totalorder %v801, 4
    %v824 = vsel %vm820, %v804, %v807
    %v825 = vsel %vm823, %v813, 2102212464
    %v826 = vsel %vm822, %v810, %v825
    %v827 = vsel %vm821, %v824, %v826
    %v828 = vsel %vm820, %v807, %v810
    %v829 = vsel %vm823, %v816, 920167782
    %v830 = vsel %vm822, %v813, %v829
    %v831 = vsel %vm821, %v828, %v830
    %v832 = vsel %vm820, %v810, %v813
    %v833 = vsel %vm823, %v819, 1326507024
    %v834 = vsel %vm822, %v816, %v833
    %v835 = vsel %vm821, %v832, %v834
    %v836 = vshll.u32 %v796, 8
    %v837 = vmul.u32.u64.compose %v836, %v835
    %v838 = vextract.low.u32 %v837
    %v839 = vextract.high.u32 %v837
    %v840 = vmul.u32.u64.compose %v836, %v831
    %v841 = vextract.low.u32 %v840
    %v842 = vextract.high.u32 %v840
    %v843 = vmul.u32 %v836, %v827
    %v844 = vadd.s32 %v839, %v841
    %vm845 = vc.u32 %v839, %v841
    %v846 = vadd.s32 %v842, 1
    %v847 = vsel %vm845, %v846, %v842
    %v848 = vadd.s32 %v843, %v847
    %v849 = vadd.s32 %v848, 536870912
    %v850 = vshrl.u32 %v849, 30
    %v851 = vshll.u32 %v850, 30
    %v852 = vsub.s32 %v848, %v851
    %vm853 = vcmp.lt.s32.totalorder %v852, 0
    %v854 = vsub.s32 0, %v852
    %v855 = vsel %vm853, %v854, %v852
    %v856 = vclz %v855
    %v857 = vsub.s32 %v856, 2
    %vm858 = vcmp.gt.s32.totalorder 0, %v857
    %v859 = vsel %vm858, 0, %v857
    %v860 = vsub.s32 32, %v859
    %v861 = vshll.u32 %v852, %v859
    %v862 = vshrl.u32 %v844, %v860
    %v863 = vor.u32 %v861, %v862
    %v864 = vsub.s32 4294967266, %v859
    %v865 = vadd.s32 %v864, 127
    %v866 = vshll.u32 %v865, 23
    %v867 = vor.u32 4788187, %v866
    %v868 = vand.u32 2147483647, %v867
    %v870 = vcvt.s32.f32 %v863
    %v871 = vmul.f32 %v870, %v868
    %v872 = vxor.u32 %v871, 2147483648
    %v873 = vsel %vm790, %v872, %v871
    %v874 = vsub.s32 4, %v850
    %v875 = vsel %vm790, %v874, %v850
    %v876 = vsel %vm789, %v478, %v873
    %v877 = vsel %vm789, 0, %v875
    %v878 = vcosq.f32.pop %v876
    %v879 = vsinq.f32.pop %v876
    %vm880 = vweird.f32 %v478
    %v881 = vand.u32 %v877, 3
    %vm882 = vcmp.lt.s32.totalorder %v881, 2
    %vm883 = vcmp.eq.s32.totalorder %v881, 0
    %v884 = vxor.u32 %v879, 2147483648
    %v885 = vsel %vm883, %v878, %v884
    %vm886 = vcmp.eq.s32.totalorder %v881, 2
    %v887 = vxor.u32 %v878, 2147483648
    %v888 = vsel %vm886, %v887, %v879
    %v889 = vsel %vm882, %v885, %v888
    %v890 = vsel %vm880, nan, %v889
    %v891 = vadd.f32 %v162, %v581
    %v892 = vadd.f32 %v266, %v684
    %v893 = vadd.f32 %v370, %v787
    %v894 = vadd.f32 %v474, %v890
    %v895 = vld [vmem:[#allocation6] sm:$0xff]
    %v896 = vld [vmem:[#allocation6 + $0x8] sm:$0xff]
    %v897 = vld [vmem:[#allocation6 + $0x10] sm:$0xff]
    %v898 = vld [vmem:[#allocation6 + $0x18] sm:$0xff]
    %v899 = vld [vmem:[#allocation6 + $0x20] sm:$0xff]
    %v900 = vld [vmem:[#allocation6 + $0x28] sm:$0xff]
    %v901 = vld [vmem:[#allocation6 + $0x30] sm:$0xff]
    %v902 = vld [vmem:[#allocation6 + $0x38] sm:$0xff]
    %vm903 = vcmask 523264
    %v905 = vsel %vm903, %v891, 0
    %v908 = vsel %vm903, %v892, 0
    %v911 = vsel %vm903, %v893, 0
    %v914 = vsel %vm903, %v894, 0
    %916 = vmatprep.subr.mxu0 0.0
    %917 = vmatpush1.msra.mxu0 %v895
    %918 = vmatprep.subr.mxu0 0.0
    %919 = vmatpush1.msra.mxu0 %v896
    %920 = vmatprep.subr.mxu0 0.0
    %921 = vmatpush1.msra.mxu0 %v897
    %922 = vmatprep.subr.mxu0 0.0
    %923 = vmatpush1.msra.mxu0 %v898
    %924 = vmatprep.subr.mxu0 0.0
    %925 = vmatpush1.msra.mxu0 %v899
    %926 = vmatprep.subr.mxu0 0.0
    %927 = vmatpush1.msra.mxu0 %v900
    %928 = vmatprep.subr.mxu0 0.0
    %929 = vmatpush1.msra.mxu0 %v901
    %930 = vmatprep.subr.mxu0 0.0
    %931 = vmatpush1.msra.mxu0 %v902
    %932 = vmatprep.subr.mxu0 0.0
    %933 = vmatpush1.msra.mxu0 0.0
    %934 = vmatprep.subr.mxu0 0.0
    %935 = vmatpush1.msra.mxu0 0.0
    %936 = vmatprep.subr.mxu0 0.0
    %937 = vmatpush1.msra.mxu0 0.0
    %938 = vmatprep.subr.mxu0 0.0
    %939 = vmatpush1.msra.mxu0 0.0
    %940 = vmatprep.subr.mxu0 0.0
    %941 = vmatpush1.msra.mxu0 0.0
    %942 = vmatprep.subr.mxu0 0.0
    %943 = vmatpush1.msra.mxu0 0.0
    %944 = vmatprep.subr.mxu0 0.0
    %945 = vmatpush1.msra.mxu0 0.0
    %946 = vmatprep.subr.mxu0 0.0
    %947 = vmatpush1.msra.mxu0 0.0
    %948 = vmatprep.subr.mxu0 0.0
    %949 = vmatpush1.msra.mxu0 0.0
    %950 = vmatprep.subr.mxu0 0.0
    %951 = vmatpush1.msra.mxu0 0.0
    %952 = vmatprep.subr.mxu0 0.0
    %953 = vmatpush1.msra.mxu0 0.0
    %954 = vmatprep.subr.mxu0 0.0
    %955 = vmatpush1.msra.mxu0 0.0
    %956 = vmatprep.subr.mxu0 0.0
    %957 = vmatpush1.msra.mxu0 0.0
    %958 = vmatprep.subr.mxu0 0.0
    %959 = vmatpush1.msra.mxu0 0.0
    %960 = vmatprep.subr.mxu0 0.0
    %961 = vmatpush1.msra.mxu0 0.0
    %962 = vmatprep.subr.mxu0 0.0
    %963 = vmatpush1.msra.mxu0 0.0
    %964 = vmatprep.subr.mxu0 0.0
    %965 = vmatpush1.msra.mxu0 0.0
    %966 = vmatprep.subr.mxu0 0.0
    %967 = vmatpush1.msra.mxu0 0.0
    %968 = vmatprep.subr.mxu0 0.0
    %969 = vmatpush1.msra.mxu0 0.0
    %970 = vmatprep.subr.mxu0 0.0
    %971 = vmatpush1.msra.mxu0 0.0
    %972 = vmatprep.subr.mxu0 0.0
    %973 = vmatpush1.msra.mxu0 0.0
    %974 = vmatprep.subr.mxu0 0.0
    %975 = vmatpush1.msra.mxu0 0.0
    %976 = vmatprep.subr.mxu0 0.0
    %977 = vmatpush1.msra.mxu0 0.0
    %978 = vmatprep.subr.mxu0 0.0
    %979 = vmatpush1.msra.mxu0 0.0
    %980 = vmatprep.mubr.f32.mxu0 0.0
    %981 = vmatmul.mubr.f32.gmra.mrb[0].mxu0 %v905
    %v982 = vpop.f32.mrb[0].mxu0
    %v983 = vadd.f32 0.0, %v982
    %v984 = vpop.f32.mrb[0].mxu0
    %985 = vmatprep.mubr.f32.mxu0 0.0
    %986 = vmatmul.mubr.f32.gmra.mrb[0].mxu0 %v908
    %v987 = vpop.f32.mrb[0].mxu0
    %v988 = vadd.f32 0.0, %v987
    %v989 = vpop.f32.mrb[0].mxu0
    %990 = vmatprep.mubr.f32.mxu0 0.0
    %991 = vmatmul.mubr.f32.gmra.mrb[0].mxu0 %v911
    %v992 = vpop.f32.mrb[0].mxu0
    %v993 = vadd.f32 0.0, %v992
    %v994 = vpop.f32.mrb[0].mxu0
    %995 = vmatprep.mubr.f32.mxu0 0.0
    %996 = vmatmul.mubr.f32.gmra.mrb[0].mxu0 %v914
    %v997 = vpop.f32.mrb[0].mxu0
    %v998 = vadd.f32 0.0, %v997
    %v999 = vpop.f32.mrb[0].mxu0
    %1000 = vdwg.mxu0
    %vm1001 = vcmask 80896
    %1002 = vst.msk [vmem:[%s3] sm:$0xff] %vm1001, %v983
    %1003 = vst.msk [vmem:[%s3 + $0x8] sm:$0xff] %vm1001, %v988
    %1004 = vst.msk [vmem:[%s3 + $0x10] sm:$0xff] %vm1001, %v993
    %1005 = vst.msk [vmem:[%s3 + $0x18] sm:$0xff] %vm1001, %v998
    // Predicated region
    $region26: #{tpu_custom_call.1} parent=1 // pred_check
      _
    $region27: #{tpu_custom_call.1} parent=1 // pred_check_branch
      %1007 = sbr.rel (0) target = $region29
    $region28: #{tpu_custom_call.1} parent=1 // pred_region
      _
    $region29: #{tpu_custom_call.1} parent=1 // pred_fallthru
      _
    // Predicated region
    $region30: #{tpu_custom_call.1} parent=1 // pred_check
      _
    $region31: #{tpu_custom_call.1} parent=1 // pred_check_branch
      %1009 = sbr.rel (0) target = $region33
    $region32: #{tpu_custom_call.1} parent=1 // pred_region
      _
    $region33: #{tpu_custom_call.1} parent=1 // pred_fallthru
      _
    %1010 = vsyncpa [#allocation3], 1
    %1011 = vsyncpa [#allocation5], 1

</llo_original>
